<compile_context>
chip_gen: v5e
topology: v5e:2x2
jax: 0.10.0
libtpu: 0.0.40
codegen_flags: <defaults>
</compile_context>

<pallas_src>
import jax
import jax.numpy as jnp
from jax.experimental import pallas as pl
from jax.experimental.pallas import tpu as pltpu


def _round_up(n, m):
    return ((n + m - 1) // m) * m


def _linear_kernel(x_ref, w_ref, o_ref):
    # x_ref: (TBp, packed_in)        lane-dense activation tile (streamed)
    # w_ref: (packed_in, packed_out) resident weight (constant index_map),
    #                                already transposed/block-diagonalized
    # o_ref: (TBp, packed_out)       lane-dense output tile (128 lanes packed)
    o_ref[...] = jnp.dot(
        x_ref[...], w_ref[...], preferred_element_type=jnp.float32
    ).astype(o_ref.dtype)


def encoder_x2y_forward(x, weight, *, tb=8192):
    """Forward pass of Encoder_X2Y.

    x:      (B, 2N)  activations
    weight: (2L, 2N) PyTorch nn.Linear weight layout (NOT transposed)
    returns (B, 2L)
    """
    B, in_f = x.shape
    out_f, in_f_w = weight.shape
    assert in_f == in_f_w, "feature mismatch"

    # ---- lane densification (block-diagonal packing) -----------------------
    if out_f < 128 and 128 % out_f == 0 and in_f * (128 // out_f) <= 4096:
        pack = 128 // out_f
    else:
        pack = 1  # already lane-dense enough; plain GEMM with W^T

    pad_rows = (-B) % pack  # only pads up to pack-1 (<8) rows, usually 0
    x_in = x if pad_rows == 0 else jnp.pad(x, ((0, pad_rows), (0, 0)))
    b_pad = B + pad_rows
    bp = b_pad // pack
    packed_in = pack * in_f
    packed_out = pack * out_f

    # One-time wrapper-side weight prep (tiny): W^T on the block diagonal so
    # the kernel never has to relayout/transpose W per grid step.
    w_t = weight.T  # (in_f, out_f)
    w_used = w_t if pack == 1 else jnp.kron(jnp.eye(pack, dtype=weight.dtype), w_t)

    xp = x_in.reshape(bp, packed_in)  # free, contiguous reshape

    # ---- batch tile selection ----------------------------------------------
    tbp_req = _round_up(max(tb // pack, 8), 8)  # requested packed-row tile
    if bp <= 8:
        tbp = bp  # single full block (block dims == full array dims)
    elif bp <= tbp_req:
        # Keep >=2 grid steps so both v7x TensorCores get work.
        tbp = _round_up(pl.cdiv(bp, 2), 8)
    else:
        tbp = tbp_req
    grid = (pl.cdiv(bp, tbp),)  # partial final block handled by Pallas

    # VMEM budget: double-buffered X/Y tiles + resident weight + slack.
    itemsize = x.dtype.itemsize
    vmem_bytes = (
        2 * tbp * packed_in * itemsize
        + 2 * tbp * packed_out * itemsize
        + 2 * packed_in * packed_out * weight.dtype.itemsize
        + (2 << 20)
    )
    vmem_limit = int(min(max(vmem_bytes, 4 << 20), 32 << 20))

    out_p = pl.pallas_call(
        _linear_kernel,
        out_shape=jax.ShapeDtypeStruct((bp, packed_out), x.dtype),
        grid_spec=pltpu.PrefetchScalarGridSpec(
            num_scalar_prefetch=0,
            grid=grid,
            in_specs=[
                # X: tiled over (packed) batch -> double-buffered DMA pipeline.
                pl.BlockSpec((tbp, packed_in), lambda i: (i, 0)),
                # W: constant index_map -> fetched once, stays resident in VMEM.
                pl.BlockSpec((packed_in, packed_out), lambda i: (0, 0)),
            ],
            out_specs=pl.BlockSpec((tbp, packed_out), lambda i: (i, 0)),
        ),
        compiler_params=pltpu.CompilerParams(
            dimension_semantics=("parallel",),  # batch tiles independent
            vmem_limit_bytes=vmem_limit,
        ),
        cost_estimate=pl.CostEstimate(
            flops=2 * bp * packed_in * packed_out,
            transcendentals=0,
            bytes_accessed=itemsize
            * (bp * packed_in + packed_in * packed_out + bp * packed_out),
        ),
    )(xp, w_used)

    out = out_p.reshape(b_pad, out_f)  # free reshape back to (B, 2L)
    return out if pad_rows == 0 else out[:B]

    # TODO(synk): optional bf16 storage of X/W (f32 accumulate) would halve
    # HBM traffic on v6e/v7x; kept f32 here to match the reference exactly.


def encoder_x2y_reference(x, weight):
    return x @ weight.T


if __name__ == "__main__":
    # Module hyperparameters (small, deterministic).
    N = 16    # -> in_features  = 2*N = 32
    L = 8     # -> out_features = 2*L = 16
    B = 200   # batch; multiple of the pack factor 8 -> zero-copy path

    key = jax.random.PRNGKey(0)
    kx, kw = jax.random.split(key)

    # Deterministic "initialization" of the Linear weight (shape (2L, 2N)),
    # matching PyTorch's kaiming-uniform bound 1/sqrt(fan_in).
    fan_in = 2 * N
    bound = 1.0 / (fan_in ** 0.5)
    weight = jax.random.uniform(
        kw, (2 * L, 2 * N), dtype=jnp.float32, minval=-bound, maxval=bound
    )
    x = jax.random.normal(kx, (B, 2 * N), dtype=jnp.float32)

    # Main run: packed path, 2-step grid (partial final block exercised).
    y = encoder_x2y_forward(x, weight)
    y = jax.block_until_ready(y)
    y_ref = encoder_x2y_reference(x, weight)
    assert y.shape == (B, 2 * L)
    assert jnp.allclose(y, y_ref, atol=1e-4, rtol=1e-4), "mismatch vs reference"

    # Secondary check: ragged batch (exercises the small pack-padding path).
    x2 = jax.random.normal(jax.random.PRNGKey(1), (13, 2 * N), dtype=jnp.float32)
    y2 = jax.block_until_ready(encoder_x2y_forward(x2, weight))
    assert jnp.allclose(y2, encoder_x2y_reference(x2, weight), atol=1e-4, rtol=1e-4)

    print("KERNEL_OK")
</pallas_src>

<mosaic_0001>
module attributes {stable_mosaic.version = 11 : i64} {
  func.func @_linear_kernel(%arg0: i32, %arg1: memref<16x256xf32, #tpu.memory_space<vmem>>, %arg2: memref<256x128xf32, #tpu.memory_space<vmem>>, %arg3: memref<16x128xf32, #tpu.memory_space<vmem>>) attributes {dimension_semantics = [#tpu.dimension_semantics<parallel>], iteration_bounds = array<i64: 2>, scalar_prefetch = 0 : i64, scratch_operands = 0 : i64, tpu.core_type = #tpu.core_type<tc>, window_params = [{transform_indices = @transform_0, window_bounds = array<i64: 16, 256>}, {pipeline_mode = #tpu.pipeline_mode<synchronous>, transform_indices = @transform_1, window_bounds = array<i64: 256, 128>}, {transform_indices = @transform_2, window_bounds = array<i64: 16, 128>}]} {
    %c0 = arith.constant 0 : index
    %c0_0 = arith.constant 0 : index
    %0 = vector.load %arg1[%c0, %c0_0] : memref<16x256xf32, #tpu.memory_space<vmem>>, vector<16x256xf32>
    %c0_1 = arith.constant 0 : index
    %c0_2 = arith.constant 0 : index
    %1 = vector.load %arg2[%c0_1, %c0_2] : memref<256x128xf32, #tpu.memory_space<vmem>>, vector<256x128xf32>
    %cst = arith.constant dense<0.000000e+00> : vector<16x128xf32>
    %2 = tpu.matmul %0, %1, %cst {dimension_numbers = #tpu.dot_dimension_numbers<[1], [0], [0], [1], [0, 0, 1, 1], [], []>} : vector<16x256xf32>, vector<256x128xf32>, vector<16x128xf32> -> vector<16x128xf32>
    %c0_3 = arith.constant 0 : index
    %c0_4 = arith.constant 0 : index
    %3 = vector.load %arg3[%c0_3, %c0_4] : memref<16x128xf32, #tpu.memory_space<vmem>>, vector<16x128xf32>
    tpu.vector_store %arg3[%c0_3, %c0_4], %2 {strides = array<i32>} : memref<16x128xf32, #tpu.memory_space<vmem>>, vector<16x128xf32>,
    return
  }
  func.func @transform_0(%arg0: i32) -> (i32, i32) {
    %c0_i32 = arith.constant 0 : i32
    %c0_i32_0 = arith.constant 0 : i32
    return %arg0, %c0_i32 : i32, i32
  }
  func.func @transform_1(%arg0: i32) -> (i32, i32) {
    %c0_i32 = arith.constant 0 : i32
    %c0_i32_0 = arith.constant 0 : i32
    %c0_i32_1 = arith.constant 0 : i32
    return %c0_i32, %c0_i32_0 : i32, i32
  }
  func.func @transform_2(%arg0: i32) -> (i32, i32) {
    %c0_i32 = arith.constant 0 : i32
    %c0_i32_0 = arith.constant 0 : i32
    return %arg0, %c0_i32 : i32, i32
  }
}

</mosaic_0001>

<llo_original>
// kernel: tpu_custom_call.1
$region0: #{tpu_custom_call.1}
  #allocation0 [shape = 'u32[]', space=smem, size = 0x4, offset = 0x4, fixed_abs, tag = 'smem constant byte address 0x4 - core index']
  #allocation1 [shape = 'u32[72,128]{1,0:T(1,128)}', space=vmem, size = 0x9000, scoped, tag = 'internal scratch']
  %s0 = inlined_call_operand.hbm [shape: f32[25,256], index: 0, kind: input, shape index: {}]
  %s1 = inlined_call_operand.hbm [shape: f32[256,128], index: 1, kind: input, shape index: {}]
  %s2 = inlined_call_operand.hbm [shape: f32[25,128], index: 2, kind: output, shape index: {}]
  %s3 = sld [smem:[#allocation0]]
  $region49: #{tpu_custom_call.1} parent=0
    _
  %s5 = ssub.s32 1, %s3
  %s6 = scalar_select 0, %s5, %s3
  $region1: #{tpu_custom_call.1} parent=0
    #allocation2 [shape = 'u8[32768]{0}', space=vmem, size = 0x8000, scoped, tag = 'input window, operand 0']
    #allocation3 [shape = 's32[2]{0}', space=sflag, size = 0x8, scoped, tag = 'scoped memory for tpu_custom_call.1']
    #allocation4 [shape = 's32[2]{0}', space=sflag, size = 0x8, scoped, tag = 'scoped memory for tpu_custom_call.1']
    #allocation5 [shape = 'u8[131072]{0}', space=vmem, size = 0x20000, scoped, tag = 'input window, operand 1, single buffered']
    #allocation6 [shape = 's32[1]{0}', space=sflag, size = 0x4, scoped, tag = 'scoped memory for tpu_custom_call.1']
    #allocation7 [shape = 'u8[16384]{0}', space=vmem, size = 0x4000, scoped, tag = 'output window, operand 0']
    %7 = vsyncpa [#allocation3], 0
    %s8 = scalar_lea.sflag [#allocation3], 1
    %9 = vsyncpa %s8, 0
    %10 = vsyncpa [#allocation6], 0
    %11 = vsyncpa [#allocation4], 0
    %s12 = scalar_lea.sflag [#allocation4], 1
    %13 = vsyncpa %s12, 0
    loop: start=0, step=1, limit=4
    $region2: #{tpu_custom_call.1} parent=1 // loop_pre_header
      _
    $region3: #{tpu_custom_call.1} parent=1 // loop_header
      %s15 = sphi 0, %s19
      %p16 = scmp.ge.s32.totalorder %s15, 4
      %s25 = sphi 0, %s27
      %s28 = sphi 0, %s25
      %s29 = sphi 0, %s28
      %s45 = sphi 0, %s29
      %s49 = sphi 0, %s49
      %s51 = sphi 0, %s49
      %s52 = sphi 0, %s51
      %s66 = sphi 0, %s52
      %s72 = sphi 0, %s74
      %s75 = sphi 0, %s72
      %s76 = sphi 0, %s75
      %s92 = sphi 0, %s76
    $region4: #{tpu_custom_call.1} parent=1 // loop_header_branch
      %18 = sbr.rel (%p16) target = $region8
    $region5: #{tpu_custom_call.1} parent=1 // loop_body
      %s20 = ssub.s32 %s15, 1
      %s21 = ssub.s32 %s15, 2
      %s22 = sadd.s32 %s15, 1
      %s23 = ssub.s32 %s15, %s22
      %p24 = scmp.eq.s32.totalorder %s23, 0
      %s26 = sadd.s32 %s25, 1
      %s27 = scalar_select %p24, %s25, %s26
      %p30 = pneg %p24
      %p31 = scmp.eq.s32.totalorder %s15, 1
      %p32 = por %p30, %p31
      %p33 = scmp.ne.s32.totalorder %s25, %s28
      %p34 = scmp.eq.s32.totalorder %s15, 0
      %p35 = por %p33, %p34
      %p36 = scmp.ne.s32.totalorder %s25, %s28
      %p37 = scmp.eq.s32.totalorder %s20, 1
      %p38 = por %p36, %p37
      %p39 = scmp.ne.s32.totalorder %s28, %s29
      %p40 = scmp.eq.s32.totalorder %s20, 0
      %p41 = por %p39, %p40
      %p42 = scmp.ne.s32.totalorder %s28, %s29
      %p43 = scmp.eq.s32.totalorder %s21, 1
      %p44 = por %p42, %p43
      %p46 = scmp.ne.s32.totalorder %s29, %s45
      %p47 = scmp.eq.s32.totalorder %s21, 0
      %p48 = por %p46, %p47
      %s50 = sadd.s32 %s49, 1
      %p53 = scmp.eq.s32.totalorder %s15, 1
      %p54 = scmp.ne.s32.totalorder %s49, %s51
      %p55 = scmp.eq.s32.totalorder %s15, 0
      %p56 = por %p54, %p55
      %p57 = scmp.ne.s32.totalorder %s49, %s51
      %p58 = scmp.eq.s32.totalorder %s20, 1
      %p59 = por %p57, %p58
      %p60 = scmp.ne.s32.totalorder %s51, %s52
      %p61 = scmp.eq.s32.totalorder %s20, 0
      %p62 = por %p60, %p61
      %p63 = scmp.ne.s32.totalorder %s51, %s52
      %p64 = scmp.eq.s32.totalorder %s21, 1
      %p65 = por %p63, %p64
      %p67 = scmp.ne.s32.totalorder %s52, %s66
      %p68 = scmp.eq.s32.totalorder %s21, 0
      %p69 = por %p67, %p68
      %s70 = ssub.s32 %s15, %s22
      %p71 = scmp.eq.s32.totalorder %s70, 0
      %s73 = sadd.s32 %s72, 1
      %s74 = scalar_select %p71, %s72, %s73
      %p77 = pneg %p71
      %p78 = scmp.eq.s32.totalorder %s15, 1
      %p79 = por %p77, %p78
      %p80 = scmp.ne.s32.totalorder %s72, %s75
      %p81 = scmp.eq.s32.totalorder %s15, 0
      %p82 = por %p80, %p81
      %p83 = scmp.ne.s32.totalorder %s72, %s75
      %p84 = scmp.eq.s32.totalorder %s20, 1
      %p85 = por %p83, %p84
      %p86 = scmp.ne.s32.totalorder %s75, %s76
      %p87 = scmp.eq.s32.totalorder %s20, 0
      %p88 = por %p86, %p87
      %p89 = scmp.ne.s32.totalorder %s75, %s76
      %p90 = scmp.eq.s32.totalorder %s21, 1
      %p91 = por %p89, %p90
      %p93 = scmp.ne.s32.totalorder %s76, %s92
      %p94 = scmp.eq.s32.totalorder %s21, 0
      %p95 = por %p93, %p94
      %p96 = scmp.le.s32.totalorder 1, %s15
      %p97 = scmp.lt.s32.totalorder %s15, 3
      %p98 = pnand %p96, %p97
      %p99 = pneg %p98
      // Predicated region
      $region9: #{tpu_custom_call.1} parent=5 // pred_check
        _
      $region10: #{tpu_custom_call.1} parent=5 // pred_check_branch
        %101 = sbr.rel (%p98) target = $region12
      $region11: #{tpu_custom_call.1} parent=5 // pred_region
        %s102 = ssub.s32 %s15, 1
        // Predicated region
        $region13: #{tpu_custom_call.1} parent=11 // pred_check
          %p103 = pneg %p62
        $region14: #{tpu_custom_call.1} parent=11 // pred_check_branch
          %105 = sbr.rel (%p103) target = $region16
        $region15: #{tpu_custom_call.1} parent=11 // pred_region
          %107 = vsyncadd [#allocation6], 0
          %s108 = sshll.u32 %s1, 4
          %s109 = int_to_ptr.hbm [resolvable:$true] %s108
          %s110 = sshll.u32 [#allocation5], 4
          %s111 = int_to_ptr.vmem [resolvable:$true] %s110
          %116 = dma.hbm_to_vmem [thread:$0]  %s109, 4096, %s111, [#allocation6], 128, 128, 8
        $region16: #{tpu_custom_call.1} parent=11 // pred_fallthru
          _
      $region12: #{tpu_custom_call.1} parent=5 // pred_fallthru
        _
      %p117 = scmp.lt.s32.totalorder %s15, 2
      // Predicated region
      $region17: #{tpu_custom_call.1} parent=5 // pred_check
        %p118 = pneg %p117
      $region18: #{tpu_custom_call.1} parent=5 // pred_check_branch
        %120 = sbr.rel (%p118) target = $region20
      $region19: #{tpu_custom_call.1} parent=5 // pred_region
        // Predicated region
        $region21: #{tpu_custom_call.1} parent=19 // pred_check
          %p121 = pneg %p35
        $region22: #{tpu_custom_call.1} parent=19 // pred_check_branch
          %123 = sbr.rel (%p121) target = $region24
        $region23: #{tpu_custom_call.1} parent=19 // pred_region
          %s124 = sand.u32 %s25, 1
          %s125 = scalar_lea.sflag [#allocation3], %s124
          %s126 = sand.u32 %s25, 1
          %s127 = smul.addr %s126, 32
          %s128 = scalar_lea.vmem [#allocation2], %s127
          %s129 = smul.u32 2, %s15
          %131 = vsyncadd %s125, 0
          %s132 = smul.addr %s129, 2
          %s133 = smul.addr %s132, 8
          %s134 = scalar_lea.hbm %s0, %s133
          %s135 = sshll.u32 %s134, 4
          %s136 = int_to_ptr.hbm [resolvable:$true] %s135
          %s137 = sshll.u32 %s128, 4
          %s138 = int_to_ptr.vmem [resolvable:$true] %s137
          %143 = dma.hbm_to_vmem [thread:$0]  %s136, 512, %s138, %s125, 256, 256, 16
        $region24: #{tpu_custom_call.1} parent=19 // pred_fallthru
          _
      $region20: #{tpu_custom_call.1} parent=5 // pred_fallthru
        _
      %p144 = scmp.le.s32.totalorder 1, %s15
      %p145 = scmp.lt.s32.totalorder %s15, 3
      %p146 = pnand %p144, %p145
      %p147 = pneg %p146
      // Predicated region
      $region25: #{tpu_custom_call.1} parent=5 // pred_check
        _
      $region26: #{tpu_custom_call.1} parent=5 // pred_check_branch
        %149 = sbr.rel (%p146) target = $region28
      $region27: #{tpu_custom_call.1} parent=5 // pred_region
        %s150 = ssub.s32 %s15, 1
        %s151 = sand.u32 %s28, 1
        %s152 = scalar_lea.sflag [#allocation3], %s151
        %s153 = sand.u32 %s28, 1
        %s154 = smul.addr %s153, 32
        %s155 = scalar_lea.vmem [#allocation2], %s154
        // Predicated region
        $region29: #{tpu_custom_call.1} parent=27 // pred_check
          %p156 = pneg %p41
        $region30: #{tpu_custom_call.1} parent=27 // pred_check_branch
          %158 = sbr.rel (%p156) target = $region32
        $region31: #{tpu_custom_call.1} parent=27 // pred_region
          %160 = dma.done %s152, 512
        $region32: #{tpu_custom_call.1} parent=27 // pred_fallthru
          _
        // Predicated region
        $region33: #{tpu_custom_call.1} parent=27 // pred_check
          %p161 = pneg %p62
        $region34: #{tpu_custom_call.1} parent=27 // pred_check_branch
          %163 = sbr.rel (%p161) target = $region36
        $region35: #{tpu_custom_call.1} parent=27 // pred_region
          %165 = dma.done [#allocation6], 4096
        $region36: #{tpu_custom_call.1} parent=27 // pred_fallthru
          _
        %s166 = sand.u32 %s28, 1
        %s167 = scalar_lea.sflag [#allocation3], %s166
        %s168 = sand.u32 %s28, 1
        %s169 = smul.addr %s168, 32
        %s170 = scalar_lea.vmem [#allocation2], %s169
        %p171 = pneg %p41
        %p172 = pneg %p38
        %p173 = pneg %p62
        %p174 = pneg %p59
        %p175 = pneg %p88
        %p176 = pneg %p85
        %s177 = sand.u32 %s75, 1
        %s178 = scalar_lea.sflag [#allocation4], %s177
        %s179 = sand.u32 %s75, 1
        %s180 = smul.addr %s179, 16
        %s181 = scalar_lea.vmem [#allocation7], %s180
        %s182 = smul.u32 2, %s20
        %s183 = smul.u32 2, %s20
        %v184 = vld [vmem:[%s155] sm:$0xff]
        %v185 = vld [vmem:[%s155 + $0x8] sm:$0xff]
        %v186 = vld [vmem:[%s155 + $0x10] sm:$0xff]
        %v187 = vld [vmem:[%s155 + $0x18] sm:$0xff]
        %v188 = vld [vmem:[#allocation5] sm:$0xff]
        %v189 = vld [vmem:[#allocation5 + $0x8] sm:$0xff]
        %v190 = vld [vmem:[#allocation5 + $0x10] sm:$0xff]
        %v191 = vld [vmem:[#allocation5 + $0x18] sm:$0xff]
        %v192 = vld [vmem:[#allocation5 + $0x20] sm:$0xff]
        %v193 = vld [vmem:[#allocation5 + $0x28] sm:$0xff]
        %v194 = vld [vmem:[#allocation5 + $0x30] sm:$0xff]
        %v195 = vld [vmem:[#allocation5 + $0x38] sm:$0xff]
        %v196 = vld [vmem:[#allocation5 + $0x40] sm:$0xff]
        %v197 = vld [vmem:[#allocation5 + $0x48] sm:$0xff]
        %v198 = vld [vmem:[#allocation5 + $0x50] sm:$0xff]
        %v199 = vld [vmem:[#allocation5 + $0x58] sm:$0xff]
        %v200 = vld [vmem:[#allocation5 + $0x60] sm:$0xff]
        %v201 = vld [vmem:[#allocation5 + $0x68] sm:$0xff]
        %v202 = vld [vmem:[#allocation5 + $0x70] sm:$0xff]
        %v203 = vld [vmem:[#allocation5 + $0x78] sm:$0xff]
        %v204 = vld [vmem:[#allocation5 + $0x80] sm:$0xff]
        %v205 = vld [vmem:[#allocation5 + $0x88] sm:$0xff]
        %v206 = vld [vmem:[#allocation5 + $0x90] sm:$0xff]
        %v207 = vld [vmem:[#allocation5 + $0x98] sm:$0xff]
        %v208 = vld [vmem:[#allocation5 + $0xa0] sm:$0xff]
        %v209 = vld [vmem:[#allocation5 + $0xa8] sm:$0xff]
        %v210 = vld [vmem:[#allocation5 + $0xb0] sm:$0xff]
        %v211 = vld [vmem:[#allocation5 + $0xb8] sm:$0xff]
        %v212 = vld [vmem:[#allocation5 + $0xc0] sm:$0xff]
        %v213 = vld [vmem:[#allocation5 + $0xc8] sm:$0xff]
        %v214 = vld [vmem:[#allocation5 + $0xd0] sm:$0xff]
        %v215 = vld [vmem:[#allocation5 + $0xd8] sm:$0xff]
        %v216 = vld [vmem:[#allocation5 + $0xe0] sm:$0xff]
        %v217 = vld [vmem:[#allocation5 + $0xe8] sm:$0xff]
        %v218 = vld [vmem:[#allocation5 + $0xf0] sm:$0xff]
        %v219 = vld [vmem:[#allocation5 + $0xf8] sm:$0xff]
        %220 = vmatpush.msra.mxu0 %v203
        %221 = vmatpush.msra.mxu0 %v202
        %222 = vmatpush.msra.mxu0 %v201
        %223 = vmatpush.msra.mxu0 %v200
        %224 = vmatpush.msra.mxu0 %v199
        %225 = vmatpush.msra.mxu0 %v198
        %226 = vmatpush.msra.mxu0 %v197
        %227 = vmatpush.msra.mxu0 %v196
        %228 = vmatpush.msra.mxu0 %v195
        %229 = vmatpush.msra.mxu0 %v194
        %230 = vmatpush.msra.mxu0 %v193
        %231 = vmatpush.msra.mxu0 %v192
        %232 = vmatpush.msra.mxu0 %v191
        %233 = vmatpush.msra.mxu0 %v190
        %234 = vmatpush.msra.mxu0 %v189
        %235 = vmatpush.msra.mxu0 %v188
        %236 = vmatmul.f32.gmra.mxu0 %v184
        %v237 = vpop.f32.mrf.mxu0
        %v238 = vadd.f32 0.0, %v237
        %239 = vmatmul.f32.gmra.mxu0 %v186
        %v240 = vpop.f32.mrf.mxu0
        %v241 = vadd.f32 0.0, %v240
        %242 = vdwg.mxu0
        %243 = vmatpush.msra.mxu0 %v219
        %244 = vmatpush.msra.mxu0 %v218
        %245 = vmatpush.msra.mxu0 %v217
        %246 = vmatpush.msra.mxu0 %v216
        %247 = vmatpush.msra.mxu0 %v215
        %248 = vmatpush.msra.mxu0 %v214
        %249 = vmatpush.msra.mxu0 %v213
        %250 = vmatpush.msra.mxu0 %v212
        %251 = vmatpush.msra.mxu0 %v211
        %252 = vmatpush.msra.mxu0 %v210
        %253 = vmatpush.msra.mxu0 %v209
        %254 = vmatpush.msra.mxu0 %v208
        %255 = vmatpush.msra.mxu0 %v207
        %256 = vmatpush.msra.mxu0 %v206
        %257 = vmatpush.msra.mxu0 %v205
        %258 = vmatpush.msra.mxu0 %v204
        %259 = vmatmul.f32.gmra.mxu0 %v185
        %v260 = vpop.f32.mrf.mxu0
        %v261 = vadd.f32 %v238, %v260
        %262 = vmatmul.f32.gmra.mxu0 %v187
        %v263 = vpop.f32.mrf.mxu0
        %v264 = vadd.f32 %v241, %v263
        %265 = vdwg.mxu0
        %266 = vst [vmem:[%s181] sm:$0xff] %v261
        %267 = vst [vmem:[%s181 + $0x8] sm:$0xff] %v264
        %s268 = sand.u32 %s75, 1
        %s269 = scalar_lea.sflag [#allocation4], %s268
        %s270 = sand.u32 %s75, 1
        %s271 = smul.addr %s270, 16
        %s272 = scalar_lea.vmem [#allocation7], %s271
        // Predicated region
        $region37: #{tpu_custom_call.1} parent=27 // pred_check
          %p273 = pneg %p85
        $region38: #{tpu_custom_call.1} parent=27 // pred_check_branch
          %275 = sbr.rel (%p273) target = $region40
        $region39: #{tpu_custom_call.1} parent=27 // pred_region
          %s276 = smul.u32 2, %s20
          %278 = vsyncadd %s269, 0
          %s279 = smul.addr %s276, 8
          %s280 = scalar_lea.hbm %s2, %s279
          %s281 = sshll.u32 %s272, 4
          %s282 = int_to_ptr.vmem [resolvable:$true] %s281
          %s283 = sshll.u32 %s280, 4
          %s284 = int_to_ptr.hbm [resolvable:$true] %s283
          %289 = dma.vmem_to_hbm [thread:$0]  %s282, 256, %s284, %s269, 128, 128, 8
        $region40: #{tpu_custom_call.1} parent=27 // pred_fallthru
          _
      $region28: #{tpu_custom_call.1} parent=5 // pred_fallthru
        _
      %p290 = scmp.le.s32.totalorder 2, %s15
      // Predicated region
      $region41: #{tpu_custom_call.1} parent=5 // pred_check
        %p291 = pneg %p290
      $region42: #{tpu_custom_call.1} parent=5 // pred_check_branch
        %293 = sbr.rel (%p291) target = $region44
      $region43: #{tpu_custom_call.1} parent=5 // pred_region
        %s294 = ssub.s32 %s15, 2
        // Predicated region
        $region45: #{tpu_custom_call.1} parent=43 // pred_check
          %p295 = pneg %p91
        $region46: #{tpu_custom_call.1} parent=43 // pred_check_branch
          %297 = sbr.rel (%p295) target = $region48
        $region47: #{tpu_custom_call.1} parent=43 // pred_region
          %s298 = sand.u32 %s76, 1
          %s299 = scalar_lea.sflag [#allocation4], %s298
          %s300 = sand.u32 %s76, 1
          %s301 = smul.addr %s300, 16
          %s302 = scalar_lea.vmem [#allocation7], %s301
          %304 = dma.done %s299, 256
        $region48: #{tpu_custom_call.1} parent=43 // pred_fallthru
          _
      $region44: #{tpu_custom_call.1} parent=5 // pred_fallthru
        _
    $region6: #{tpu_custom_call.1} parent=1 // loop_footer
      %s19 = sadd.s32 1, %s15
    $region7: #{tpu_custom_call.1} parent=1 // loop_footer_branch
      %14 = sbr.rel target = $region3
    $region8: #{tpu_custom_call.1} parent=1 // loop_exit
      _
    %305 = vsyncpa [#allocation3], 1
    %s306 = scalar_lea.sflag [#allocation3], 1
    %307 = vsyncpa %s306, 1
    %308 = vsyncpa [#allocation6], 1
    %309 = vsyncpa [#allocation4], 1
    %s310 = scalar_lea.sflag [#allocation4], 1
    %311 = vsyncpa %s310, 1

</llo_original>
